<compile_context>
chip_gen: v7x
topology: tpu7x:2x2x1
jax: 0.10.0
libtpu: 0.0.40
codegen_flags: <defaults>
</compile_context>

<pallas_src>
import functools

import jax
import jax.numpy as jnp
from jax import lax
from jax.experimental import pallas as pl
from jax.experimental.pallas import tpu as pltpu

_BOXES_PER_ROW = 32          # 32 boxes * 4 coords = 128 lanes
_CHUNK_ROWS = 8              # register-resident compute chunk: one (8,128) vreg


def _roll_lanes(v, k):
    """result[..., l] = v[..., (l + k) % 128] (constant lane rotation)."""
    return jnp.roll(v, -k, axis=-1)


def _ciou_kernel(n_ref, pred_ref, targ_ref, out_ref, *, r_blk):
    """pred_ref / targ_ref: (r_blk, 128) rows of 32 interleaved [x,y,w,h] boxes.
    out_ref: (1, 128) lane-dense partial sums of masked CIoU for this block."""
    eps = 1e-6
    n = n_ref[0]
    num_chunks = r_blk // _CHUNK_ROWS

    # Lane-pattern constants, hoisted out of the chunk loop (one vreg each).
    lane = lax.broadcasted_iota(jnp.int32, (_CHUNK_ROWS, 128), 1)
    row = lax.broadcasted_iota(jnp.int32, (_CHUNK_ROWS, 128), 0)
    m = lane & 3                       # coordinate slot within a box
    m_ge2 = m >= 2
    m_lt2 = m < 2
    m_eq0 = m == 0
    idx_in_chunk = row * _BOXES_PER_ROW + (lane >> 2)
    block_base = pl.program_id(0) * (r_blk * _BOXES_PER_ROW)

    def body(c, acc):
        start = pl.multiple_of(c * _CHUNK_ROWS, _CHUNK_ROWS)
        bp = pred_ref[pl.ds(start, _CHUNK_ROWS), :]
        bt = targ_ref[pl.ds(start, _CHUNK_ROWS), :]

        # convert_to_xyxy with the slide-size round trip folded out:
        # lanes m=0,1 keep x,y; lanes m=2,3 become x+w, y+h.
        p = bp + jnp.where(m_ge2, _roll_lanes(bp, -2), 0.0)
        t = bt + jnp.where(m_ge2, _roll_lanes(bt, -2), 0.0)

        mx = jnp.maximum(p, t)
        mn = jnp.minimum(p, t)
        inter = jnp.where(m_lt2, mx, mn)     # [ix1, iy1, ix2, iy2]
        enc = jnp.where(m_lt2, mn, mx)       # enclosing box corners

        d_i = _roll_lanes(inter, 2) - inter  # (ix2-ix1, iy2-iy1) at m=0,1
        d_p = _roll_lanes(p, 2) - p          # pred (w, h) at m=0,1
        d_t = _roll_lanes(t, 2) - t          # true (w, h) at m=0,1
        d_e = _roll_lanes(enc, 2) - enc      # enclosing (w, h) at m=0,1

        iw = jnp.maximum(d_i, 0.0)
        inter_area = iw * _roll_lanes(iw, 1)           # valid at m=0
        pred_area = d_p * _roll_lanes(d_p, 1)
        true_area = d_t * _roll_lanes(d_t, 1)
        union = pred_area + true_area - inter_area
        # Exact divide: pl.reciprocal(approx=True) (~2^-12 rel err) would break
        # the 1e-5 parity tolerance against the PyTorch reference.
        iou = inter_area / (union + eps)

        diff = p - t
        dsum = diff + _roll_lanes(diff, 2)             # 2*(pc - tc) at m=0,1
        dsq = dsum * dsum
        center_dist = 0.25 * (dsq + _roll_lanes(dsq, 1))   # at m=0

        esq = d_e * d_e
        enc_diag = esq + _roll_lanes(esq, 1)               # at m=0

        aspect = jnp.exp((center_dist - enc_diag) / (enc_diag + eps))
        ciou = 1.0 - iou + aspect                          # valid at m=0

        # Only the m==0 lane of each box carries its CIoU; boxes past N
        # (row padding or Pallas edge-block garbage) are selected away, which
        # also blocks any NaN/Inf from garbage lanes.
        box_idx = block_base + start * _BOXES_PER_ROW + idx_in_chunk
        valid = m_eq0 & (box_idx < n)
        return acc + jnp.where(valid, ciou, 0.0)

    acc = lax.fori_loop(0, num_chunks, body,
                        jnp.zeros((_CHUNK_ROWS, 128), jnp.float32),
                        unroll=min(4, num_chunks))
    out_ref[...] = jnp.sum(acc, axis=0, keepdims=True)


def ciou_loss(preds, targets, slide_size, *, max_block_rows=1024):
    """preds, targets: (N, 4) float32 boxes in [x, y, w, h].
    slide_size is accepted for API parity; it cancels algebraically (x*sw/sw)."""
    del slide_size
    preds = jnp.asarray(preds, jnp.float32)
    targets = jnp.asarray(targets, jnp.float32)
    n = int(preds.shape[0])
    if n == 0:
        return jnp.array(jnp.nan, jnp.float32)  # torch .mean() of empty is NaN

    align = _CHUNK_ROWS * _BOXES_PER_ROW        # 256 boxes = 8 rows
    n_pad = ((n + align - 1) // align) * align
    rows = n_pad // _BOXES_PER_ROW

    def to_rows(b):
        if n_pad != n:
            # TODO(synk): bucket N so aligned callers always hit the copy-free path.
            b = jnp.pad(b, ((0, n_pad - n), (0, 0)))
        return b.reshape(rows, 4 * _BOXES_PER_ROW)   # copy-free when aligned

    pred_rows = to_rows(preds)
    targ_rows = to_rows(targets)

    # Block rows: multiple of 8, targeting >= ~8 grid steps when the problem
    # allows (DMA/compute overlap, v7x megacore), capped so per-step VMEM stays
    # at ~2 MiB (2 inputs x 2 buffers x r_blk*128*4B).
    r_blk = -(-rows // 8)                                        # ceil(rows/8)
    r_blk = ((r_blk + _CHUNK_ROWS - 1) // _CHUNK_ROWS) * _CHUNK_ROWS
    r_blk = max(_CHUNK_ROWS, min(max_block_rows, r_blk, rows))
    num_blocks = pl.cdiv(rows, r_blk)

    kernel = functools.partial(_ciou_kernel, r_blk=r_blk)
    partials = pl.pallas_call(
        kernel,
        out_shape=jax.ShapeDtypeStruct((num_blocks, 1, 128), jnp.float32),
        grid_spec=pltpu.PrefetchScalarGridSpec(
            num_scalar_prefetch=1,
            grid=(num_blocks,),
            in_specs=[
                pl.BlockSpec((r_blk, 128), lambda i, n_ref: (i, 0)),
                pl.BlockSpec((r_blk, 128), lambda i, n_ref: (i, 0)),
            ],
            out_specs=pl.BlockSpec((None, 1, 128), lambda i, n_ref: (i, 0, 0)),
        ),
        compiler_params=pltpu.CompilerParams(
            dimension_semantics=("parallel",)),
    )(jnp.array([n], jnp.int32), pred_rows, targ_rows)

    return jnp.sum(partials) / jnp.float32(n)


def _ciou_loss_ref(preds, targets, slide_size):
    # Pure-JAX reference mirroring the PyTorch module, for verification.
    sw, sh = float(slide_size[0]), float(slide_size[1])

    def conv(b):
        left = b[:, 0] * sw
        top = b[:, 1] * sh
        w = b[:, 2] * sw
        h = b[:, 3] * sh
        return jnp.stack([left / sw, top / sh, (left + w) / sw, (top + h) / sh], axis=1)

    p = conv(preds)
    t = conv(targets)
    x1 = jnp.maximum(p[:, 0], t[:, 0]); y1 = jnp.maximum(p[:, 1], t[:, 1])
    x2 = jnp.minimum(p[:, 2], t[:, 2]); y2 = jnp.minimum(p[:, 3], t[:, 3])
    inter = jnp.maximum(x2 - x1, 0.0) * jnp.maximum(y2 - y1, 0.0)
    pa = (p[:, 2] - p[:, 0]) * (p[:, 3] - p[:, 1])
    ta = (t[:, 2] - t[:, 0]) * (t[:, 3] - t[:, 1])
    union = pa + ta - inter
    iou = inter / (union + 1e-6)
    pcx = (p[:, 0] + p[:, 2]) / 2; pcy = (p[:, 1] + p[:, 3]) / 2
    tcx = (t[:, 0] + t[:, 2]) / 2; tcy = (t[:, 1] + t[:, 3]) / 2
    cd = (pcx - tcx) ** 2 + (pcy - tcy) ** 2
    ex1 = jnp.minimum(p[:, 0], t[:, 0]); ey1 = jnp.minimum(p[:, 1], t[:, 1])
    ex2 = jnp.maximum(p[:, 2], t[:, 2]); ey2 = jnp.maximum(p[:, 3], t[:, 3])
    ed = (ex2 - ex1) ** 2 + (ey2 - ey1) ** 2
    ar = jnp.exp(-1.0 * (ed - cd) / (ed + 1e-6))
    return jnp.mean(1.0 - iou + ar)


if __name__ == "__main__":
    key = jax.random.PRNGKey(0)
    slide_size = (640.0, 480.0)

    # Case 1: the spec's small shape (N=8 boxes, single block).
    k1, k2 = jax.random.split(key)
    preds = jax.random.uniform(k1, (8, 4), jnp.float32, minval=0.05, maxval=0.5)
    targets = jax.random.uniform(k2, (8, 4), jnp.float32, minval=0.05, maxval=0.5)
    out = jax.block_until_ready(ciou_loss(preds, targets, slide_size))
    ref = _ciou_loss_ref(preds, targets, slide_size)
    assert jnp.allclose(out, ref, atol=1e-5, rtol=1e-5), (out, ref)

    # Case 2: unaligned N exercising padding, masking, and a multi-block grid.
    k3, k4 = jax.random.split(k1)
    preds2 = jax.random.uniform(k3, (300, 4), jnp.float32, minval=0.05, maxval=0.5)
    targets2 = jax.random.uniform(k4, (300, 4), jnp.float32, minval=0.05, maxval=0.5)
    out2 = jax.block_until_ready(ciou_loss(preds2, targets2, slide_size))
    ref2 = _ciou_loss_ref(preds2, targets2, slide_size)
    assert jnp.allclose(out2, ref2, atol=1e-4, rtol=1e-4), (out2, ref2)

    print("KERNEL_OK")
</pallas_src>

<mosaic_0001>
module attributes {stable_mosaic.version = 11 : i64} {
  func.func @_ciou_kernel(%arg0: i32, %arg1: memref<1xi32, #tpu.memory_space<smem>>, %arg2: memref<8x128xf32, #tpu.memory_space<vmem>>, %arg3: memref<8x128xf32, #tpu.memory_space<vmem>>, %arg4: memref<1x1x128xf32, #tpu.memory_space<vmem>>) attributes {dimension_semantics = [#tpu.dimension_semantics<parallel>], iteration_bounds = array<i64: 1>, scalar_prefetch = 1 : i64, scratch_operands = 0 : i64, tpu.core_type = #tpu.core_type<tc>, window_params = [{transform_indices = @transform_0, window_bounds = array<i64: 8, 128>}, {transform_indices = @transform_1, window_bounds = array<i64: 8, 128>}, {transform_indices = @transform_2, window_bounds = array<i64: 1, 1, 128>}]} {
    %c0 = arith.constant 0 : index
    %0 = memref.load %arg1[%c0] : memref<1xi32, #tpu.memory_space<smem>>
    %1 = tpu.iota {dimensions = array<i32: 1>} : vector<8x128xi32>
    %2 = tpu.iota {dimensions = array<i32: 0>} : vector<8x128xi32>
    %c3_i32 = arith.constant 3 : i32
    %3 = vector.broadcast %c3_i32 : i32 to vector<8x128xi32>
    %4 = arith.andi %1, %3 : vector<8x128xi32>
    %c2_i32 = arith.constant 2 : i32
    %5 = vector.broadcast %c2_i32 : i32 to vector<8x128xi32>
    %6 = arith.cmpi sge, %4, %5 : vector<8x128xi32>
    %c2_i32_0 = arith.constant 2 : i32
    %7 = vector.broadcast %c2_i32_0 : i32 to vector<8x128xi32>
    %8 = arith.cmpi slt, %4, %7 : vector<8x128xi32>
    %c0_i32 = arith.constant 0 : i32
    %9 = vector.broadcast %c0_i32 : i32 to vector<8x128xi32>
    %10 = arith.cmpi eq, %4, %9 : vector<8x128xi32>
    %c32_i32 = arith.constant 32 : i32
    %11 = vector.broadcast %c32_i32 : i32 to vector<8x128xi32>
    %12 = arith.muli %2, %11 : vector<8x128xi32>
    %c2_i32_1 = arith.constant 2 : i32
    %13 = vector.broadcast %c2_i32_1 : i32 to vector<8x128xi32>
    %14 = arith.shrsi %1, %13 : vector<8x128xi32>
    %15 = arith.addi %12, %14 : vector<8x128xi32>
    %c256_i32 = arith.constant 256 : i32
    %16 = arith.muli %arg0, %c256_i32 : i32
    %cst = arith.constant 0.000000e+00 : f32
    %17 = vector.broadcast %cst : f32 to vector<8x128xf32>
    %c0_i32_2 = arith.constant 0 : i32
    %c8_i32 = arith.constant 8 : i32
    %18 = arith.muli %c0_i32_2, %c8_i32 : i32
    %19 = tpu.assume_multiple %18, 8 : i32
    %20 = arith.index_cast %19 : i32 to index
    %c0_3 = arith.constant 0 : index
    %21 = vector.load %arg2[%20, %c0_3] : memref<8x128xf32, #tpu.memory_space<vmem>>, vector<8x128xf32>
    %22 = arith.index_cast %19 : i32 to index
    %c0_4 = arith.constant 0 : index
    %23 = vector.load %arg3[%22, %c0_4] : memref<8x128xf32, #tpu.memory_space<vmem>>, vector<8x128xf32>
    %24 = vector.extract_strided_slice %21 {offsets = [0, 126], sizes = [8, 2], strides = [1, 1]} : vector<8x128xf32> to vector<8x2xf32>
    %25 = vector.extract_strided_slice %21 {offsets = [0, 0], sizes = [8, 126], strides = [1, 1]} : vector<8x128xf32> to vector<8x126xf32>
    %26 = tpu.concatenate %24, %25 in 1 : vector<8x2xf32>, vector<8x126xf32> -> vector<8x128xf32>
    %cst_5 = arith.constant 0.000000e+00 : f32
    %27 = vector.broadcast %cst_5 : f32 to vector<8x128xf32>
    %28 = arith.select %6, %26, %27 : vector<8x128xi1>, vector<8x128xf32>
    %29 = arith.addf %21, %28 : vector<8x128xf32>
    %30 = vector.extract_strided_slice %23 {offsets = [0, 126], sizes = [8, 2], strides = [1, 1]} : vector<8x128xf32> to vector<8x2xf32>
    %31 = vector.extract_strided_slice %23 {offsets = [0, 0], sizes = [8, 126], strides = [1, 1]} : vector<8x128xf32> to vector<8x126xf32>
    %32 = tpu.concatenate %30, %31 in 1 : vector<8x2xf32>, vector<8x126xf32> -> vector<8x128xf32>
    %cst_6 = arith.constant 0.000000e+00 : f32
    %33 = vector.broadcast %cst_6 : f32 to vector<8x128xf32>
    %34 = arith.select %6, %32, %33 : vector<8x128xi1>, vector<8x128xf32>
    %35 = arith.addf %23, %34 : vector<8x128xf32>
    %36 = arith.maximumf %29, %35 : vector<8x128xf32>
    %37 = arith.minimumf %29, %35 : vector<8x128xf32>
    %38 = arith.select %8, %36, %37 : vector<8x128xi1>, vector<8x128xf32>
    %39 = arith.select %8, %37, %36 : vector<8x128xi1>, vector<8x128xf32>
    %40 = vector.extract_strided_slice %38 {offsets = [0, 2], sizes = [8, 126], strides = [1, 1]} : vector<8x128xf32> to vector<8x126xf32>
    %41 = vector.extract_strided_slice %38 {offsets = [0, 0], sizes = [8, 2], strides = [1, 1]} : vector<8x128xf32> to vector<8x2xf32>
    %42 = tpu.concatenate %40, %41 in 1 : vector<8x126xf32>, vector<8x2xf32> -> vector<8x128xf32>
    %43 = arith.subf %42, %38 : vector<8x128xf32>
    %44 = vector.extract_strided_slice %29 {offsets = [0, 2], sizes = [8, 126], strides = [1, 1]} : vector<8x128xf32> to vector<8x126xf32>
    %45 = vector.extract_strided_slice %29 {offsets = [0, 0], sizes = [8, 2], strides = [1, 1]} : vector<8x128xf32> to vector<8x2xf32>
    %46 = tpu.concatenate %44, %45 in 1 : vector<8x126xf32>, vector<8x2xf32> -> vector<8x128xf32>
    %47 = arith.subf %46, %29 : vector<8x128xf32>
    %48 = vector.extract_strided_slice %35 {offsets = [0, 2], sizes = [8, 126], strides = [1, 1]} : vector<8x128xf32> to vector<8x126xf32>
    %49 = vector.extract_strided_slice %35 {offsets = [0, 0], sizes = [8, 2], strides = [1, 1]} : vector<8x128xf32> to vector<8x2xf32>
    %50 = tpu.concatenate %48, %49 in 1 : vector<8x126xf32>, vector<8x2xf32> -> vector<8x128xf32>
    %51 = arith.subf %50, %35 : vector<8x128xf32>
    %52 = vector.extract_strided_slice %39 {offsets = [0, 2], sizes = [8, 126], strides = [1, 1]} : vector<8x128xf32> to vector<8x126xf32>
    %53 = vector.extract_strided_slice %39 {offsets = [0, 0], sizes = [8, 2], strides = [1, 1]} : vector<8x128xf32> to vector<8x2xf32>
    %54 = tpu.concatenate %52, %53 in 1 : vector<8x126xf32>, vector<8x2xf32> -> vector<8x128xf32>
    %55 = arith.subf %54, %39 : vector<8x128xf32>
    %cst_7 = arith.constant 0.000000e+00 : f32
    %56 = vector.broadcast %cst_7 : f32 to vector<8x128xf32>
    %57 = arith.maximumf %43, %56 : vector<8x128xf32>
    %58 = vector.extract_strided_slice %57 {offsets = [0, 1], sizes = [8, 127], strides = [1, 1]} : vector<8x128xf32> to vector<8x127xf32>
    %59 = vector.extract_strided_slice %57 {offsets = [0, 0], sizes = [8, 1], strides = [1, 1]} : vector<8x128xf32> to vector<8x1xf32>
    %60 = tpu.concatenate %58, %59 in 1 : vector<8x127xf32>, vector<8x1xf32> -> vector<8x128xf32>
    %61 = arith.mulf %57, %60 : vector<8x128xf32>
    %62 = vector.extract_strided_slice %47 {offsets = [0, 1], sizes = [8, 127], strides = [1, 1]} : vector<8x128xf32> to vector<8x127xf32>
    %63 = vector.extract_strided_slice %47 {offsets = [0, 0], sizes = [8, 1], strides = [1, 1]} : vector<8x128xf32> to vector<8x1xf32>
    %64 = tpu.concatenate %62, %63 in 1 : vector<8x127xf32>, vector<8x1xf32> -> vector<8x128xf32>
    %65 = arith.mulf %47, %64 : vector<8x128xf32>
    %66 = vector.extract_strided_slice %51 {offsets = [0, 1], sizes = [8, 127], strides = [1, 1]} : vector<8x128xf32> to vector<8x127xf32>
    %67 = vector.extract_strided_slice %51 {offsets = [0, 0], sizes = [8, 1], strides = [1, 1]} : vector<8x128xf32> to vector<8x1xf32>
    %68 = tpu.concatenate %66, %67 in 1 : vector<8x127xf32>, vector<8x1xf32> -> vector<8x128xf32>
    %69 = arith.mulf %51, %68 : vector<8x128xf32>
    %70 = arith.addf %65, %69 : vector<8x128xf32>
    %71 = arith.subf %70, %61 : vector<8x128xf32>
    %cst_8 = arith.constant 9.99999997E-7 : f32
    %72 = vector.broadcast %cst_8 : f32 to vector<8x128xf32>
    %73 = arith.addf %71, %72 : vector<8x128xf32>
    %74 = arith.divf %61, %73 : vector<8x128xf32>
    %75 = arith.subf %29, %35 : vector<8x128xf32>
    %76 = vector.extract_strided_slice %75 {offsets = [0, 2], sizes = [8, 126], strides = [1, 1]} : vector<8x128xf32> to vector<8x126xf32>
    %77 = vector.extract_strided_slice %75 {offsets = [0, 0], sizes = [8, 2], strides = [1, 1]} : vector<8x128xf32> to vector<8x2xf32>
    %78 = tpu.concatenate %76, %77 in 1 : vector<8x126xf32>, vector<8x2xf32> -> vector<8x128xf32>
    %79 = arith.addf %75, %78 : vector<8x128xf32>
    %80 = arith.mulf %79, %79 : vector<8x128xf32>
    %81 = vector.extract_strided_slice %80 {offsets = [0, 1], sizes = [8, 127], strides = [1, 1]} : vector<8x128xf32> to vector<8x127xf32>
    %82 = vector.extract_strided_slice %80 {offsets = [0, 0], sizes = [8, 1], strides = [1, 1]} : vector<8x128xf32> to vector<8x1xf32>
    %83 = tpu.concatenate %81, %82 in 1 : vector<8x127xf32>, vector<8x1xf32> -> vector<8x128xf32>
    %84 = arith.addf %80, %83 : vector<8x128xf32>
    %cst_9 = arith.constant 2.500000e-01 : f32
    %85 = vector.broadcast %cst_9 : f32 to vector<8x128xf32>
    %86 = arith.mulf %85, %84 : vector<8x128xf32>
    %87 = arith.mulf %55, %55 : vector<8x128xf32>
    %88 = vector.extract_strided_slice %87 {offsets = [0, 1], sizes = [8, 127], strides = [1, 1]} : vector<8x128xf32> to vector<8x127xf32>
    %89 = vector.extract_strided_slice %87 {offsets = [0, 0], sizes = [8, 1], strides = [1, 1]} : vector<8x128xf32> to vector<8x1xf32>
    %90 = tpu.concatenate %88, %89 in 1 : vector<8x127xf32>, vector<8x1xf32> -> vector<8x128xf32>
    %91 = arith.addf %87, %90 : vector<8x128xf32>
    %92 = arith.subf %86, %91 : vector<8x128xf32>
    %cst_10 = arith.constant 9.99999997E-7 : f32
    %93 = vector.broadcast %cst_10 : f32 to vector<8x128xf32>
    %94 = arith.addf %91, %93 : vector<8x128xf32>
    %95 = arith.divf %92, %94 : vector<8x128xf32>
    %96 = math.exp %95 : vector<8x128xf32>
    %cst_11 = arith.constant 1.000000e+00 : f32
    %97 = vector.broadcast %cst_11 : f32 to vector<8x128xf32>
    %98 = arith.subf %97, %74 : vector<8x128xf32>
    %99 = arith.addf %98, %96 : vector<8x128xf32>
    %c32_i32_12 = arith.constant 32 : i32
    %100 = arith.muli %19, %c32_i32_12 : i32
    %101 = arith.addi %16, %100 : i32
    %102 = vector.broadcast %101 : i32 to vector<8x128xi32>
    %103 = arith.addi %102, %15 : vector<8x128xi32>
    %104 = vector.broadcast %0 : i32 to vector<8x128xi32>
    %105 = arith.cmpi slt, %103, %104 : vector<8x128xi32>
    %106 = arith.andi %10, %105 : vector<8x128xi1>
    %cst_13 = arith.constant 0.000000e+00 : f32
    %107 = vector.broadcast %cst_13 : f32 to vector<8x128xf32>
    %108 = arith.select %106, %99, %107 : vector<8x128xi1>, vector<8x128xf32>
    %109 = arith.addf %17, %108 : vector<8x128xf32>
    %c1_i32 = arith.constant 1 : i32
    %cst_14 = arith.constant dense<0.000000e+00> : vector<128xf32>
    %110 = vector.multi_reduction <add>, %109, %cst_14 [0] : vector<8x128xf32> to vector<128xf32>
    %111 = vector.shape_cast %110 : vector<128xf32> to vector<1x128xf32>
    %c0_15 = arith.constant 0 : index
    %c0_16 = arith.constant 0 : index
    %c0_17 = arith.constant 0 : index
    %112 = vector.load %arg4[%c0_15, %c0_16, %c0_17] : memref<1x1x128xf32, #tpu.memory_space<vmem>>, vector<1x1x128xf32>
    %113 = vector.shape_cast %112 : vector<1x1x128xf32> to vector<1x128xf32>
    %114 = vector.shape_cast %111 : vector<1x128xf32> to vector<1x1x128xf32>
    tpu.vector_store %arg4[%c0_15, %c0_16, %c0_17], %114 {strides = array<i32>} : memref<1x1x128xf32, #tpu.memory_space<vmem>>, vector<1x1x128xf32>,
    return
  }
  func.func @transform_0(%arg0: i32, %arg1: memref<1xi32, #tpu.memory_space<smem>>) -> (i32, i32) {
    %c0_i32 = arith.constant 0 : i32
    %c0_i32_0 = arith.constant 0 : i32
    return %arg0, %c0_i32 : i32, i32
  }
  func.func @transform_1(%arg0: i32, %arg1: memref<1xi32, #tpu.memory_space<smem>>) -> (i32, i32) {
    %c0_i32 = arith.constant 0 : i32
    %c0_i32_0 = arith.constant 0 : i32
    return %arg0, %c0_i32 : i32, i32
  }
  func.func @transform_2(%arg0: i32, %arg1: memref<1xi32, #tpu.memory_space<smem>>) -> (i32, i32, i32) {
    %c0_i32 = arith.constant 0 : i32
    %c0_i32_0 = arith.constant 0 : i32
    %c0_i32_1 = arith.constant 0 : i32
    return %arg0, %c0_i32, %c0_i32_0 : i32, i32, i32
  }
}

</mosaic_0001>

<llo_original>
// kernel: tpu_custom_call.1
$region0: #{tpu_custom_call.1}
  #allocation0 [shape = 'u32[]', space=smem, size = 0x4, offset = 0x4, fixed_abs, tag = 'smem constant byte address 0x4 - core index']
  #allocation1 [shape = 'u32[144,128]{1,0:T(1,128)}', space=vmem, size = 0x12000, scoped, tag = 'internal scratch']
  #allocation2 [shape = 's32[1]{0}', space=sflag, size = 0x4, scoped, tag = 'scoped memory for tpu_custom_call.1']
  #allocation3 [shape = 's32[1]{0:T(128)S(6)}', space=smem, size = 0x200, scoped, tag = 'prefetched SMEM operand 0']
  %s0 = inlined_call_operand.<no memory space> [shape: s32[1], index: 0, kind: input, shape index: {}]
  %s1 = inlined_call_operand.hbm [shape: f32[8,128], index: 1, kind: input, shape index: {}]
  %s2 = inlined_call_operand.hbm [shape: f32[8,128], index: 2, kind: input, shape index: {}]
  %s3 = inlined_call_operand.hbm [shape: f32[1,1,128], index: 3, kind: output, shape index: {}]
  %s4 = sld [smem:[#allocation0]]
  $region26: #{tpu_custom_call.1} parent=0
    _
  %s6 = ssub.s32 1, %s4
  %s7 = scalar_select 0, %s6, %s4
  %8 = sst [smem:[#allocation3]] %s0
  $region1: #{tpu_custom_call.1} parent=0
    #allocation4 [shape = 'u8[4096]{0}', space=vmem, size = 0x1000, scoped, tag = 'input window, operand 1, single buffered']
    #allocation5 [shape = 's32[1]{0}', space=sflag, size = 0x4, scoped, tag = 'scoped memory for tpu_custom_call.1']
    #allocation6 [shape = 's32[1]{0}', space=sflag, size = 0x4, scoped, tag = 'scoped memory for tpu_custom_call.1']
    #allocation7 [shape = 'u8[4096]{0}', space=vmem, size = 0x1000, scoped, tag = 'input window, operand 2, single buffered']
    #allocation8 [shape = 's32[1]{0}', space=sflag, size = 0x4, scoped, tag = 'scoped memory for tpu_custom_call.1']
    #allocation9 [shape = 'u8[512]{0}', space=vmem, size = 0x400, scoped, tag = 'output window, operand 0, single buffered']
    %9 = vsyncpa [#allocation5], 0
    %10 = vsyncpa [#allocation8], 0
    %11 = vsyncpa [#allocation6], 0
    // Predicated region
    $region2: #{tpu_custom_call.1} parent=1 // pred_check
      _
    $region3: #{tpu_custom_call.1} parent=1 // pred_check_branch
      %13 = sbr.rel (0) target = $region5
    $region4: #{tpu_custom_call.1} parent=1 // pred_region
      %s15 = ssub.s32 128, 128
      %16 = vsyncadd [#allocation5], %s15
      %s18 = sshll.u32 [#allocation4], 4
      %s19 = int_to_ptr.vmem [resolvable:$true] %s18
      %21 = dma.hbm_to_vmem [thread:$0]  %s1, 128, %s19, [#allocation5]
    $region5: #{tpu_custom_call.1} parent=1 // pred_fallthru
      _
    // Predicated region
    $region6: #{tpu_custom_call.1} parent=1 // pred_check
      _
    $region7: #{tpu_custom_call.1} parent=1 // pred_check_branch
      %23 = sbr.rel (0) target = $region9
    $region8: #{tpu_custom_call.1} parent=1 // pred_region
      %s25 = ssub.s32 128, 128
      %26 = vsyncadd [#allocation8], %s25
      %s28 = sshll.u32 [#allocation7], 4
      %s29 = int_to_ptr.vmem [resolvable:$true] %s28
      %31 = dma.hbm_to_vmem [thread:$0]  %s2, 128, %s29, [#allocation8]
    $region9: #{tpu_custom_call.1} parent=1 // pred_fallthru
      _
    // Predicated region
    $region10: #{tpu_custom_call.1} parent=1 // pred_check
      _
    $region11: #{tpu_custom_call.1} parent=1 // pred_check_branch
      %33 = sbr.rel (0) target = $region13
    $region12: #{tpu_custom_call.1} parent=1 // pred_region
      %34 = dma.done [#allocation5], 128
    $region13: #{tpu_custom_call.1} parent=1 // pred_fallthru
      _
    // Predicated region
    $region14: #{tpu_custom_call.1} parent=1 // pred_check
      _
    $region15: #{tpu_custom_call.1} parent=1 // pred_check_branch
      %36 = sbr.rel (0) target = $region17
    $region16: #{tpu_custom_call.1} parent=1 // pred_region
      %37 = dma.done [#allocation8], 128
    $region17: #{tpu_custom_call.1} parent=1 // pred_fallthru
      _
    %s38 = sld [smem:[#allocation3]]
    %v39 = vlaneseq
    %v40 = vand.u32 %v39, 127
    %v41 = vlaneseq
    %v42 = vshrl.u32 %v41, 7
    %v43 = vand.u32 %v40, 3
    %vm44 = vcmp.ge.s32.totalorder %v43, 2
    %vm45 = vcmp.lt.s32.totalorder %v43, 2
    %vm46 = vcmp.eq.s32.totalorder %v43, 0
    %v47 = vmul.u32 %v42, 32
    %v48 = vshra.s32 %v40, 2
    %v49 = vadd.s32 %v47, %v48
    %s50 = smul.u32 0, 256
    %v51 = vld [vmem:[#allocation4] sm:$0xff]
    %v52 = vld [vmem:[#allocation7] sm:$0xff]
    %54 = vrot.lane.b32.xlu0 %v51, 2
    %v55 = vpop.permute.xlu0 %54
    %v57 = vsel %vm44, %v55, 0.0
    %v58 = vadd.f32 %v51, %v57
    %60 = vrot.lane.b32.xlu0 %v52, 2
    %v61 = vpop.permute.xlu0 %60
    %v63 = vsel %vm44, %v61, 0.0
    %v64 = vadd.f32 %v52, %v63
    %v65 = vmax.f32 %v58, %v64
    %v66 = vmin.f32 %v58, %v64
    %v67 = vsel %vm45, %v65, %v66
    %v68 = vsel %vm45, %v66, %v65
    %70 = vrot.lane.b32.xlu0 %v67, 126
    %v71 = vpop.permute.xlu0 %70
    %v73 = vsub.f32 %v71, %v67
    %75 = vrot.lane.b32.xlu0 %v58, 126
    %v76 = vpop.permute.xlu0 %75
    %v78 = vsub.f32 %v76, %v58
    %80 = vrot.lane.b32.xlu0 %v64, 126
    %v81 = vpop.permute.xlu0 %80
    %v83 = vsub.f32 %v81, %v64
    %85 = vrot.lane.b32.xlu0 %v68, 126
    %v86 = vpop.permute.xlu0 %85
    %v88 = vsub.f32 %v86, %v68
    %v89 = vmax.f32 %v73, 0.0
    %91 = vrot.lane.b32.xlu0 %v89, 127
    %v92 = vpop.permute.xlu0 %91
    %v94 = vmul.f32 %v89, %v92
    %96 = vrot.lane.b32.xlu0 %v78, 127
    %v97 = vpop.permute.xlu0 %96
    %v99 = vmul.f32 %v78, %v97
    %101 = vrot.lane.b32.xlu0 %v83, 127
    %v102 = vpop.permute.xlu0 %101
    %v104 = vmul.f32 %v83, %v102
    %v105 = vadd.f32 %v99, %v104
    %v106 = vsub.f32 %v105, %v94
    %v107 = vadd.f32 %v106, 1e-06
    %v108 = vrcp.pop %v107
    %v109 = vmul.f32 %v94, %v108
    %v110 = vsub.f32 %v58, %v64
    %112 = vrot.lane.b32.xlu0 %v110, 126
    %v113 = vpop.permute.xlu0 %112
    %v115 = vadd.f32 %v110, %v113
    %v116 = vmul.f32 %v115, %v115
    %118 = vrot.lane.b32.xlu0 %v116, 127
    %v119 = vpop.permute.xlu0 %118
    %v121 = vadd.f32 %v116, %v119
    %v122 = vmul.f32 %v121, 0.25
    %v123 = vmul.f32 %v88, %v88
    %125 = vrot.lane.b32.xlu0 %v123, 127
    %v126 = vpop.permute.xlu0 %125
    %v128 = vadd.f32 %v123, %v126
    %v129 = vsub.f32 %v122, %v128
    %v130 = vadd.f32 %v128, 1e-06
    %v131 = vrcp.pop %v130
    %v132 = vmul.f32 %v129, %v131
    %v133 = vmul.f32 %v132, 1.442695
    %v134 = vpow.pop %v133
    %v135 = vsub.f32 1.0, %v109
    %v136 = vadd.f32 %v135, %v134
    %s137 = smul.u32 0, 32
    %s138 = sadd.s32 %s50, %s137
    %v139 = vstv %s138
    %v140 = vadd.s32 %v139, %v49
    %v141 = vstv %s38
    %vm142 = vcmp.lt.s32.totalorder %v140, %v141
    %vm143 = vmand %vm46, %vm142
    %v144 = vsel %vm143, %v136, 0.0
    %v145 = vadd.f32 %v144, 0.0
    %v146 = vrot.slane %v145, 4
    %v147 = vadd.f32 %v145, %v146
    %v148 = vrot.slane %v147, 2
    %v149 = vadd.f32 %v147, %v148
    %v150 = vrot.slane %v149, 1
    %v151 = vadd.f32 %v149, %v150
    %152 = vst [vmem:[#allocation9] sm:$0x1] %v151
    // Predicated region
    $region18: #{tpu_custom_call.1} parent=1 // pred_check
      _
    $region19: #{tpu_custom_call.1} parent=1 // pred_check_branch
      %154 = sbr.rel (0) target = $region21
    $region20: #{tpu_custom_call.1} parent=1 // pred_region
      %s156 = ssub.s32 16, 16
      %157 = vsyncadd [#allocation6], %s156
      %s159 = sshll.u32 [#allocation9], 4
      %s160 = int_to_ptr.vmem [resolvable:$true] %s159
      %162 = dma.vmem_to_hbm [thread:$0]  %s160, 16, %s3, [#allocation6]
    $region21: #{tpu_custom_call.1} parent=1 // pred_fallthru
      _
    // Predicated region
    $region22: #{tpu_custom_call.1} parent=1 // pred_check
      _
    $region23: #{tpu_custom_call.1} parent=1 // pred_check_branch
      %164 = sbr.rel (0) target = $region25
    $region24: #{tpu_custom_call.1} parent=1 // pred_region
      %165 = dma.done [#allocation6], 16
    $region25: #{tpu_custom_call.1} parent=1 // pred_fallthru
      _
    %166 = vsyncpa [#allocation5], 1
    %167 = vsyncpa [#allocation8], 1
    %168 = vsyncpa [#allocation6], 1

</llo_original>
